<compile_context>
chip_gen: v5e
topology: v5e:2x2
jax: 0.10.0
libtpu: 0.0.40
codegen_flags: <defaults>
</compile_context>

<pallas_src>
import math

import jax
import jax.numpy as jnp
from jax.experimental import pallas as pl
from jax.experimental.pallas import tpu as pltpu


_MAX_FOLDED_LANES = 2048   # cap on the folded lane width


def _spatial_dropout_kernel(mask_ref, x_ref, o_ref):
    # mask_ref: (1, tn) pre-scaled keep mask (0 or 1/(1-p)), VMEM-resident.
    # x_ref / o_ref: (tm, tn) row tile. One broadcast multiply per element.
    o_ref[...] = x_ref[...] * mask_ref[...]


def _round_up(x, m):
    return -(-x // m) * m


def _budgets():
    """(block_bytes, vmem_limit_bytes) tuned per chip generation."""
    try:
        cap = pltpu.get_tpu_info().vmem_capacity_bytes
    except Exception:
        cap = 64 * 1024 * 1024  # conservative: assume v7x-sized VMEM
    block = 8 * 1024 * 1024
    if cap >= 128 * 1024 * 1024:          # v5e / v6e (128 MiB physical)
        return block, 64 * 1024 * 1024
    return block, 48 * 1024 * 1024        # v7x (64 MiB physical)


def _lane_fold(M, D):
    """Fold factor k (dividing M): prefer k*D a multiple of 128; otherwise the
    largest power-of-two k dividing M, subject to k*D <= _MAX_FOLDED_LANES."""
    if D % 128 == 0 or D >= _MAX_FOLDED_LANES:
        return 1
    base = 128 // math.gcd(D, 128)        # always a power of two
    if M % base == 0 and base * D <= _MAX_FOLDED_LANES:
        k = base                          # 128-aligned folding reachable
    else:
        k = 1                             # still fold for wider stores
    while M % (2 * k) == 0 and (2 * k) * D <= _MAX_FOLDED_LANES:
        k *= 2
    return k


def spatial_dropout_1d(x, p, seed, *, training=True, donate_x=False):
    """Pallas SpatialDropout1D. x: (B, L, D). Drops whole feature columns
    (last axis) and rescales survivors by 1/(1-p)."""
    if not training or p == 0.0:
        return x  # eval mode / p=0 -> identity (matches nn.Dropout2d)
    if p >= 1.0:
        return jnp.zeros_like(x)

    B, L, D = x.shape
    M = B * L
    keep_prob = 1.0 - float(p)

    # Per-feature keep mask, pre-scaled by 1/keep_prob, stored in x.dtype so the
    # kernel does a single vmul per element.  NOTE: for bf16/fp8 the scale is
    # rounded into x.dtype before the multiply (<~4e-4 rel. error vs f32 scale).
    key = jax.random.PRNGKey(seed)
    keep = jax.random.bernoulli(key, keep_prob, (D,))
    mask = jnp.where(keep,
                     jnp.asarray(1.0 / keep_prob, x.dtype),
                     jnp.asarray(0.0, x.dtype))

    # Lane-dense folding: (M, D) -> (Mf, Df).
    k = _lane_fold(M, D)
    Mf, Df = M // k, k * D
    x2 = x.reshape(Mf, Df)
    mask2 = jnp.tile(mask, k).reshape(1, Df)

    itemsize = jnp.dtype(x.dtype).itemsize
    block_bytes, vmem_limit = _budgets()

    # Pathological width: Df not 128-aligned AND even an 8-row full-width strip
    # busts the block budget -> pad columns to a multiple of 128 so we can tile.
    pad = 0
    if Df % 128 != 0 and 8 * Df * itemsize > block_bytes:
        pad = (-Df) % 128
        x2 = jnp.pad(x2, ((0, 0), (0, pad)))
        mask2 = jnp.pad(mask2, ((0, 0), (0, pad)))
        Df += pad

    # Column tile: full width unless a ~32-row full-width strip exceeds the
    # budget; in that case size tn so tm*tn*itemsize ~= block_bytes (fixes the
    # previous 8x-budget blow-up).
    if 8 * Df * itemsize > block_bytes:        # here Df % 128 == 0 is guaranteed
        tn = max(128, (block_bytes // (32 * itemsize)) // 128 * 128)
        tn = min(tn, Df)
    else:
        tn = Df

    # Row tile: fill the block budget (multiples of 32 rows for packed dtypes),
    # but cap it so the row axis still has ~8 grid steps (v7x megacore sharding
    # + DMA/compute overlap on every generation).
    max_rows = max(8, (block_bytes // (tn * itemsize)) // 32 * 32)
    rows_for_steps = max(8, _round_up(-(-Mf // 8), 32))
    tm = min(max_rows, rows_for_steps)
    if tm >= Mf:
        tm = Mf                                # small input: single row block

    grid = (pl.cdiv(Mf, tm), pl.cdiv(Df, tn))

    call_kwargs = {}
    if donate_x:
        # Alias x2 -> out: no separate output HBM allocation when x is donated.
        call_kwargs["input_output_aliases"] = {1: 0}

    out = pl.pallas_call(
        _spatial_dropout_kernel,
        out_shape=jax.ShapeDtypeStruct((Mf, Df), x.dtype),
        grid=grid,
        in_specs=[
            pl.BlockSpec((1, tn), lambda i, j: (0, j)),    # mask stays resident
            pl.BlockSpec((tm, tn), lambda i, j: (i, j)),   # x row tile
        ],
        out_specs=pl.BlockSpec((tm, tn), lambda i, j: (i, j)),
        compiler_params=pltpu.CompilerParams(
            dimension_semantics=("parallel", "parallel"),
            vmem_limit_bytes=vmem_limit,
        ),
        **call_kwargs,
    )(mask2, x2)

    if pad:
        out = out[:, : Df - pad]
    return out.reshape(B, L, D)


def _check_feature_wise(x, y, p, tol=1e-5):
    """Every feature column is either entirely zeroed or an exact 1/(1-p)-scaled
    copy of the input column (the spatial-dropout property)."""
    scale = jnp.asarray(1.0 / (1.0 - p), jnp.float32)
    xf, yf = x.astype(jnp.float32), y.astype(jnp.float32)
    col_zero = jnp.all(yf == 0.0, axis=(0, 1))
    col_scaled = jnp.all(jnp.abs(yf - xf * scale) < tol * jnp.maximum(1.0, jnp.abs(xf * scale)),
                         axis=(0, 1))
    return bool(jnp.all(col_zero | col_scaled))


if __name__ == "__main__":
    key = jax.random.PRNGKey(0)

    # 1) Small shape consistent with the module's forward: (B, L, D).
    B, L, D = 2, 8, 32
    p = 0.5
    x = jax.random.normal(key, (B, L, D), dtype=jnp.float32)
    y = jax.block_until_ready(spatial_dropout_1d(x, p, seed=1234, training=True))
    assert _check_feature_wise(x, y, p), "mask is not feature-wise"

    # 2) Awkward D (not 128-aligned, odd): exercises the relaxed lane-fold path.
    x_b = jax.random.normal(jax.random.PRNGKey(1), (2, 7, 33), dtype=jnp.float32)
    y_b = jax.block_until_ready(spatial_dropout_1d(x_b, 0.3, seed=7, training=True))
    assert _check_feature_wise(x_b, y_b, 0.3), "fallback mask is not feature-wise"

    # 3) Moderate size: exercises the multi-row-block grid (several grid steps).
    x_c = jax.random.normal(jax.random.PRNGKey(2), (4, 256, 192), dtype=jnp.float32)
    y_c = jax.block_until_ready(spatial_dropout_1d(x_c, 0.2, seed=99, training=True))
    assert _check_feature_wise(x_c, y_c, 0.2), "multi-block mask is not feature-wise"

    # 4) bf16: structural check only (zeroed positions form whole feature columns).
    x_d = jax.random.normal(jax.random.PRNGKey(3), (2, 64, 48), dtype=jnp.bfloat16)
    y_d = jax.block_until_ready(spatial_dropout_1d(x_d, 0.25, seed=5, training=True))
    zcols = jnp.all(y_d == 0, axis=(0, 1))
    assert bool(jnp.all(jnp.where(zcols[None, None, :], y_d == 0, y_d != 0))), \
        "bf16 mask is not feature-wise"

    # 5) Eval mode: identity.
    y_eval = jax.block_until_ready(spatial_dropout_1d(x, p, seed=1234, training=False))
    assert bool(jnp.all(y_eval == x))

    print("KERNEL_OK")
</pallas_src>

<mosaic_0001>
module attributes {stable_mosaic.version = 11 : i64} {
  func.func @_spatial_dropout_kernel(%arg0: i32, %arg1: i32, %arg2: memref<1x512xf32, #tpu.memory_space<vmem>>, %arg3: memref<1x512xf32, #tpu.memory_space<vmem>>, %arg4: memref<1x512xf32, #tpu.memory_space<vmem>>) attributes {dimension_semantics = [#tpu.dimension_semantics<parallel>, #tpu.dimension_semantics<parallel>], iteration_bounds = array<i64: 1, 1>, scalar_prefetch = 0 : i64, scratch_operands = 0 : i64, tpu.core_type = #tpu.core_type<tc>, window_params = [{transform_indices = @transform_0, window_bounds = array<i64: 1, 512>}, {transform_indices = @transform_1, window_bounds = array<i64: 1, 512>}, {transform_indices = @transform_2, window_bounds = array<i64: 1, 512>}]} {
    %c0 = arith.constant 0 : index
    %c0_0 = arith.constant 0 : index
    %0 = vector.load %arg3[%c0, %c0_0] : memref<1x512xf32, #tpu.memory_space<vmem>>, vector<1x512xf32>
    %c0_1 = arith.constant 0 : index
    %c0_2 = arith.constant 0 : index
    %1 = vector.load %arg2[%c0_1, %c0_2] : memref<1x512xf32, #tpu.memory_space<vmem>>, vector<1x512xf32>
    %2 = arith.mulf %0, %1 : vector<1x512xf32>
    %c0_3 = arith.constant 0 : index
    %c0_4 = arith.constant 0 : index
    %3 = vector.load %arg4[%c0_3, %c0_4] : memref<1x512xf32, #tpu.memory_space<vmem>>, vector<1x512xf32>
    tpu.vector_store %arg4[%c0_3, %c0_4], %2 {strides = array<i32>} : memref<1x512xf32, #tpu.memory_space<vmem>>, vector<1x512xf32>,
    return
  }
  func.func @transform_0(%arg0: i32, %arg1: i32) -> (i32, i32) {
    %c0_i32 = arith.constant 0 : i32
    %c0_i32_0 = arith.constant 0 : i32
    return %c0_i32, %arg1 : i32, i32
  }
  func.func @transform_1(%arg0: i32, %arg1: i32) -> (i32, i32) {
    %c0_i32 = arith.constant 0 : i32
    return %arg0, %arg1 : i32, i32
  }
  func.func @transform_2(%arg0: i32, %arg1: i32) -> (i32, i32) {
    %c0_i32 = arith.constant 0 : i32
    return %arg0, %arg1 : i32, i32
  }
}

</mosaic_0001>

<llo_original>
// kernel: tpu_custom_call.1
$region0: #{tpu_custom_call.1}
  #allocation0 [shape = 'u32[]', space=smem, size = 0x4, offset = 0x4, fixed_abs, tag = 'smem constant byte address 0x4 - core index']
  #allocation1 [shape = 'u32[72,128]{1,0:T(1,128)}', space=vmem, size = 0x9000, scoped, tag = 'internal scratch']
  %s0 = inlined_call_operand.hbm [shape: f32[1,512], index: 0, kind: input, shape index: {}]
  %s1 = inlined_call_operand.hbm [shape: f32[1,512], index: 1, kind: input, shape index: {}]
  %s2 = inlined_call_operand.hbm [shape: f32[1,512], index: 2, kind: output, shape index: {}]
  %s3 = sld [smem:[#allocation0]]
  $region26: #{tpu_custom_call.1} parent=0
    _
  %s5 = ssub.s32 1, %s3
  %s6 = scalar_select 0, %s5, %s3
  $region1: #{tpu_custom_call.1} parent=0
    #allocation2 [shape = 'u8[2048]{0}', space=vmem, size = 0x800, scoped, tag = 'input window, operand 0, single buffered']
    #allocation3 [shape = 's32[1]{0}', space=sflag, size = 0x4, scoped, tag = 'scoped memory for tpu_custom_call.1']
    #allocation4 [shape = 's32[1]{0}', space=sflag, size = 0x4, scoped, tag = 'scoped memory for tpu_custom_call.1']
    #allocation5 [shape = 'u8[2048]{0}', space=vmem, size = 0x800, scoped, tag = 'input window, operand 1, single buffered']
    #allocation6 [shape = 's32[1]{0}', space=sflag, size = 0x4, scoped, tag = 'scoped memory for tpu_custom_call.1']
    #allocation7 [shape = 'u8[2048]{0}', space=vmem, size = 0x800, scoped, tag = 'output window, operand 0, single buffered']
    %7 = vsyncpa [#allocation3], 0
    %8 = vsyncpa [#allocation6], 0
    %9 = vsyncpa [#allocation4], 0
    // Predicated region
    $region2: #{tpu_custom_call.1} parent=1 // pred_check
      _
    $region3: #{tpu_custom_call.1} parent=1 // pred_check_branch
      %11 = sbr.rel (0) target = $region5
    $region4: #{tpu_custom_call.1} parent=1 // pred_region
      %13 = vsyncadd [#allocation3], 0
      %s15 = sshll.u32 %s0, 4
      %s16 = int_to_ptr.hbm [resolvable:$true] %s15
      %s17 = sshll.u32 [#allocation2], 4
      %s18 = int_to_ptr.vmem [resolvable:$true] %s17
      %20 = dma.hbm_to_vmem [thread:$0]  %s16, 64, %s18, [#allocation3]
    $region5: #{tpu_custom_call.1} parent=1 // pred_fallthru
      _
    // Predicated region
    $region6: #{tpu_custom_call.1} parent=1 // pred_check
      _
    $region7: #{tpu_custom_call.1} parent=1 // pred_check_branch
      %22 = sbr.rel (0) target = $region9
    $region8: #{tpu_custom_call.1} parent=1 // pred_region
      %24 = vsyncadd [#allocation6], 0
      %s26 = sshll.u32 %s1, 4
      %s27 = int_to_ptr.hbm [resolvable:$true] %s26
      %s28 = sshll.u32 [#allocation5], 4
      %s29 = int_to_ptr.vmem [resolvable:$true] %s28
      %31 = dma.hbm_to_vmem [thread:$0]  %s27, 64, %s29, [#allocation6]
    $region9: #{tpu_custom_call.1} parent=1 // pred_fallthru
      _
    // Predicated region
    $region10: #{tpu_custom_call.1} parent=1 // pred_check
      _
    $region11: #{tpu_custom_call.1} parent=1 // pred_check_branch
      %33 = sbr.rel (0) target = $region13
    $region12: #{tpu_custom_call.1} parent=1 // pred_region
      %35 = dma.done [#allocation3], 64
    $region13: #{tpu_custom_call.1} parent=1 // pred_fallthru
      _
    // Predicated region
    $region14: #{tpu_custom_call.1} parent=1 // pred_check
      _
    $region15: #{tpu_custom_call.1} parent=1 // pred_check_branch
      %37 = sbr.rel (0) target = $region17
    $region16: #{tpu_custom_call.1} parent=1 // pred_region
      %39 = dma.done [#allocation6], 64
    $region17: #{tpu_custom_call.1} parent=1 // pred_fallthru
      _
    %v40 = vld [vmem:[#allocation5] sm:$0xf]
    %v41 = vld [vmem:[#allocation2] sm:$0xf]
    %v42 = vmul.f32 %v40, %v41
    %v43 = vlaneseq
    %vm44 = vcmp.ge.s32.totalorder %v43, 0
    %vm45 = vcmp.lt.s32.totalorder %v43, 512
    %vm46 = vmand %vm44, %vm45
    %47 = vst.msk [vmem:[#allocation7] sm:$0xf] %vm46, %v42
    // Predicated region
    $region18: #{tpu_custom_call.1} parent=1 // pred_check
      _
    $region19: #{tpu_custom_call.1} parent=1 // pred_check_branch
      %49 = sbr.rel (0) target = $region21
    $region20: #{tpu_custom_call.1} parent=1 // pred_region
      %51 = vsyncadd [#allocation4], 0
      %s53 = sshll.u32 [#allocation7], 4
      %s54 = int_to_ptr.vmem [resolvable:$true] %s53
      %s55 = sshll.u32 %s2, 4
      %s56 = int_to_ptr.hbm [resolvable:$true] %s55
      %58 = dma.vmem_to_hbm [thread:$0]  %s54, 64, %s56, [#allocation4]
    $region21: #{tpu_custom_call.1} parent=1 // pred_fallthru
      _
    // Predicated region
    $region22: #{tpu_custom_call.1} parent=1 // pred_check
      _
    $region23: #{tpu_custom_call.1} parent=1 // pred_check_branch
      %60 = sbr.rel (0) target = $region25
    $region24: #{tpu_custom_call.1} parent=1 // pred_region
      %62 = dma.done [#allocation4], 64
    $region25: #{tpu_custom_call.1} parent=1 // pred_fallthru
      _
    %63 = vsyncpa [#allocation3], 1
    %64 = vsyncpa [#allocation6], 1
    %65 = vsyncpa [#allocation4], 1

</llo_original>
